<compile_context>
chip_gen: v7x
topology: tpu7x:2x2x1
jax: 0.10.0
libtpu: 0.0.40
codegen_flags: <defaults>
</compile_context>

<pallas_src>
import functools

import numpy as np
import jax
import jax.numpy as jnp
from jax.experimental import pallas as pl
from jax.experimental.pallas import tpu as pltpu


def gcn_kernel(adj_ref, w1_ref, b1_ref, w2_ref, b2_ref, out_ref):
    # adj / W1 / W2 arrive pre-cast to bf16 (MXU operand dtype); biases stay
    # f32 and are added to the f32 MXU accumulators.
    adj = adj_ref[...]

    # --- GraphConvolution 1 (x = identity  =>  x @ W1 == W1) ---
    h1 = jnp.dot(adj, w1_ref[...],
                 preferred_element_type=jnp.float32) + b1_ref[...]
    h1 = jnp.maximum(h1, 0.0)                               # ReLU

    # Dropout(p=0.3): eval-mode => identity.
    # TODO(synk): training-mode dropout would need a pltpu.prng_* mask; the
    # torch RNG stream cannot be reproduced bit-exactly anyway.

    # --- GraphConvolution 2: adj @ (h1 @ W2) + b2 ---
    s2 = jnp.dot(h1.astype(jnp.bfloat16), w2_ref[...],
                 preferred_element_type=jnp.float32)
    out = jnp.dot(adj, s2.astype(jnp.bfloat16),
                  preferred_element_type=jnp.float32) + b2_ref[...]
    out_ref[...] = out.astype(out_ref.dtype)


def _round_up_128(n):
    return max(128, ((n + 127) // 128) * 128)


def _pad_dim(a, target, axis):
    pad = target - a.shape[axis]
    if pad <= 0:
        return a
    widths = [(0, 0)] * a.ndim
    widths[axis] = (0, pad)
    return jnp.pad(a, widths)


def prepare_gcn_params(adj, w1, b1, w2, b2):
    """Init-time preparation (out of the per-call path).

    Zero-pads voc and emb to lane-dense multiples of 128 and casts the MXU
    operands (adj, W1, W2) to bf16.  Padding is exact: padded rows/columns are
    zero and contribute nothing to the valid [:voc, :emb] output slice.  Must
    be applied AFTER row_normalize so normalization is not perturbed.

    adj: [G, voc, voc]  w1: [G, voc, emb]  b1: [G, 1, emb]
    w2:  [G, emb, emb]  b2: [G, 1, emb]
    """
    voc = adj.shape[-1]
    emb = w1.shape[-1]
    voc_p, emb_p = _round_up_128(voc), _round_up_128(emb)

    adj_p = _pad_dim(_pad_dim(adj, voc_p, -1), voc_p, -2).astype(jnp.bfloat16)
    w1_p = _pad_dim(_pad_dim(w1, emb_p, -1), voc_p, -2).astype(jnp.bfloat16)
    b1_p = _pad_dim(b1, emb_p, -1).astype(jnp.float32)
    w2_p = _pad_dim(_pad_dim(w2, emb_p, -1), emb_p, -2).astype(jnp.bfloat16)
    b2_p = _pad_dim(b2, emb_p, -1).astype(jnp.float32)
    return adj_p, w1_p, b1_p, w2_p, b2_p


@functools.partial(jax.jit, static_argnames=("voc", "emb"))
def gcn_apply(adj_p, w1_p, b1_p, w2_p, b2_p, *, voc, emb):
    """Jitted forward on pre-padded params -> [G, voc, emb] bf16."""
    g, voc_p, _ = adj_p.shape
    emb_p = w1_p.shape[-1]

    def spec(shape):
        # Leading GCN axis is squeezed out of the kernel refs (2-D inside).
        return pl.BlockSpec((pl.Squeezed(),) + shape, lambda i: (i, 0, 0))

    flops = g * 2 * (voc_p * voc_p * emb_p        # adj @ W1
                     + voc_p * emb_p * emb_p      # h1 @ W2
                     + voc_p * voc_p * emb_p)     # adj @ s2
    bytes_accessed = g * (2 * voc_p * voc_p       # adj (bf16)
                          + 2 * voc_p * emb_p     # W1  (bf16)
                          + 2 * emb_p * emb_p     # W2  (bf16)
                          + 4 * 2 * emb_p         # b1, b2 (f32)
                          + 2 * voc_p * emb_p)    # out (bf16)

    out = pl.pallas_call(
        gcn_kernel,
        out_shape=jax.ShapeDtypeStruct((g, voc_p, emb_p), jnp.bfloat16),
        grid=(g,),
        in_specs=[
            spec((voc_p, voc_p)),     # adj
            spec((voc_p, emb_p)),     # W1
            spec((1, emb_p)),         # b1
            spec((emb_p, emb_p)),     # W2
            spec((1, emb_p)),         # b2
        ],
        out_specs=spec((voc_p, emb_p)),
        compiler_params=pltpu.CompilerParams(
            dimension_semantics=("parallel",)),
        cost_estimate=pl.CostEstimate(
            flops=flops, transcendentals=0, bytes_accessed=bytes_accessed),
    )(adj_p, w1_p, b1_p, w2_p, b2_p)

    # NOTE: at realistic GAMENet vocab sizes (voc ~ 2k+) keep adj resident as
    # bf16 and add a row-tile grid axis only for the layer-2 adj@s2 matmul
    # (W1/W2/h1 index_maps constant in the row axis); budget VMEM against
    # v7x's 64 MiB physical / 32 MiB scoped default and set vmem_limit_bytes
    # once the footprint exceeds the scoped default. Unnecessary at this size.

    # Lazy slice inside jit — no eager extra HBM pass over the output.
    return out[:, :voc, :emb]


def gcn_forward_batched(adj, w1, b1, w2, b2):
    """One-shot convenience: init-time padding + jitted forward."""
    padded = prepare_gcn_params(adj, w1, b1, w2, b2)
    return gcn_apply(*padded, voc=adj.shape[-1], emb=w1.shape[-1])


def gcn_forward(adj, w1, b1, w2, b2):
    """Single-GCN convenience wrapper."""
    return gcn_forward_batched(adj[None], w1[None], b1[None],
                               w2[None], b2[None])[0]


def row_normalize(mx):
    """Same as GCN.normalize in the torch module (row-normalize)."""
    rowsum = np.asarray(mx.sum(1), dtype=np.float64)
    r_inv = np.power(rowsum, -1.0).flatten()
    r_inv[np.isinf(r_inv)] = 0.0
    return np.diagflat(r_inv).dot(mx)


def make_adj(key, voc):
    # Deterministic synthetic symmetric binary adjacency, processed exactly
    # like the torch __init__: adj = row_normalize(adj + I).
    raw = (jax.random.uniform(key, (voc, voc)) > 0.9).astype(jnp.float32)
    raw = np.asarray(raw)
    raw = np.maximum(raw, raw.T)
    return jnp.asarray(row_normalize(raw + np.eye(voc)).astype(np.float32))


if __name__ == "__main__":
    voc_size = 131   # non-128-aligned (like real GAMENet vocabs) to exercise padding
    emb_dim = 64
    n_gcn = 2        # GAMENet runs two GCNs (ehr_adj, ddi_adj) of identical shape

    keys = jax.random.split(jax.random.PRNGKey(0), 5 * n_gcn)
    stdv = 1.0 / np.sqrt(emb_dim)   # GraphConvolution.reset_parameters()

    adjs, w1s, b1s, w2s, b2s = [], [], [], [], []
    for i in range(n_gcn):
        k_adj, k_w1, k_b1, k_w2, k_b2 = keys[5 * i: 5 * i + 5]
        adjs.append(make_adj(k_adj, voc_size))
        w1s.append(jax.random.uniform(k_w1, (voc_size, emb_dim),
                                      minval=-stdv, maxval=stdv, dtype=jnp.float32))
        b1s.append(jax.random.uniform(k_b1, (1, emb_dim),
                                      minval=-stdv, maxval=stdv, dtype=jnp.float32))
        w2s.append(jax.random.uniform(k_w2, (emb_dim, emb_dim),
                                      minval=-stdv, maxval=stdv, dtype=jnp.float32))
        b2s.append(jax.random.uniform(k_b2, (1, emb_dim),
                                      minval=-stdv, maxval=stdv, dtype=jnp.float32))

    adj_b = jnp.stack(adjs)
    w1_b = jnp.stack(w1s)
    b1_b = jnp.stack(b1s)
    w2_b = jnp.stack(w2s)
    b2_b = jnp.stack(b2s)

    # Init-time (once): pad + cast.  Per-call: jitted pallas_call + slice.
    params = prepare_gcn_params(adj_b, w1_b, b1_b, w2_b, b2_b)
    out = gcn_apply(*params, voc=voc_size, emb=emb_dim)
    out = jax.block_until_ready(out)
    assert out.shape == (n_gcn, voc_size, emb_dim)

    # Pure-JAX f32 reference on unpadded operands (x = identity => x@W1 == W1).
    h1_ref = jnp.maximum(jnp.einsum('gij,gjk->gik', adj_b, w1_b) + b1_b, 0.0)
    ref = jnp.einsum('gij,gjk->gik', adj_b,
                     jnp.einsum('gij,gjk->gik', h1_ref, w2_b)) + b2_b
    # bf16 MXU operands + bf16 output (f32 accumulation) => relaxed tolerance.
    np.testing.assert_allclose(np.asarray(out.astype(jnp.float32)),
                               np.asarray(ref), rtol=3e-2, atol=1e-2)

    print("KERNEL_OK")
</pallas_src>

<mosaic_0001>
module attributes {stable_mosaic.version = 11 : i64} {
  func.func @gcn_kernel(%arg0: i32, %arg1: memref<1x256x256xbf16, #tpu.memory_space<vmem>>, %arg2: memref<1x256x128xbf16, #tpu.memory_space<vmem>>, %arg3: memref<1x1x128xf32, #tpu.memory_space<vmem>>, %arg4: memref<1x128x128xbf16, #tpu.memory_space<vmem>>, %arg5: memref<1x1x128xf32, #tpu.memory_space<vmem>>, %arg6: memref<1x256x128xbf16, #tpu.memory_space<vmem>>) attributes {dimension_semantics = [#tpu.dimension_semantics<parallel>], iteration_bounds = array<i64: 2>, scalar_prefetch = 0 : i64, scratch_operands = 0 : i64, tpu.core_type = #tpu.core_type<tc>, window_params = [{transform_indices = @transform_0, window_bounds = array<i64: 1, 256, 256>}, {transform_indices = @transform_1, window_bounds = array<i64: 1, 256, 128>}, {transform_indices = @transform_2, window_bounds = array<i64: 1, 1, 128>}, {transform_indices = @transform_3, window_bounds = array<i64: 1, 128, 128>}, {transform_indices = @transform_4, window_bounds = array<i64: 1, 1, 128>}, {transform_indices = @transform_5, window_bounds = array<i64: 1, 256, 128>}]} {
    %c0 = arith.constant 0 : index
    %c0_0 = arith.constant 0 : index
    %c0_1 = arith.constant 0 : index
    %0 = vector.load %arg1[%c0, %c0_0, %c0_1] : memref<1x256x256xbf16, #tpu.memory_space<vmem>>, vector<1x256x256xbf16>
    %1 = vector.shape_cast %0 : vector<1x256x256xbf16> to vector<256x256xbf16>
    %c0_2 = arith.constant 0 : index
    %c0_3 = arith.constant 0 : index
    %c0_4 = arith.constant 0 : index
    %2 = vector.load %arg2[%c0_2, %c0_3, %c0_4] : memref<1x256x128xbf16, #tpu.memory_space<vmem>>, vector<1x256x128xbf16>
    %3 = vector.shape_cast %2 : vector<1x256x128xbf16> to vector<256x128xbf16>
    %cst = arith.constant dense<0.000000e+00> : vector<256x128xf32>
    %4 = tpu.matmul %1, %3, %cst {dimension_numbers = #tpu.dot_dimension_numbers<[1], [0], [0], [1], [0, 0, 1, 1], [], []>} : vector<256x256xbf16>, vector<256x128xbf16>, vector<256x128xf32> -> vector<256x128xf32>
    %c0_5 = arith.constant 0 : index
    %c0_6 = arith.constant 0 : index
    %c0_7 = arith.constant 0 : index
    %5 = vector.load %arg3[%c0_5, %c0_6, %c0_7] : memref<1x1x128xf32, #tpu.memory_space<vmem>>, vector<1x1x128xf32>
    %6 = vector.shape_cast %5 : vector<1x1x128xf32> to vector<1x128xf32>
    %7 = vector.broadcast %6 : vector<1x128xf32> to vector<256x128xf32>
    %8 = arith.addf %4, %7 : vector<256x128xf32>
    %cst_8 = arith.constant 0.000000e+00 : f32
    %9 = vector.broadcast %cst_8 : f32 to vector<256x128xf32>
    %10 = arith.maximumf %8, %9 : vector<256x128xf32>
    %11 = arith.truncf %10 : vector<256x128xf32> to vector<256x128xbf16>
    %c0_9 = arith.constant 0 : index
    %c0_10 = arith.constant 0 : index
    %c0_11 = arith.constant 0 : index
    %12 = vector.load %arg4[%c0_9, %c0_10, %c0_11] : memref<1x128x128xbf16, #tpu.memory_space<vmem>>, vector<1x128x128xbf16>
    %13 = vector.shape_cast %12 : vector<1x128x128xbf16> to vector<128x128xbf16>
    %cst_12 = arith.constant dense<0.000000e+00> : vector<256x128xf32>
    %14 = tpu.matmul %11, %13, %cst_12 {dimension_numbers = #tpu.dot_dimension_numbers<[1], [0], [0], [1], [0, 0, 1, 1], [], []>} : vector<256x128xbf16>, vector<128x128xbf16>, vector<256x128xf32> -> vector<256x128xf32>
    %15 = arith.truncf %14 : vector<256x128xf32> to vector<256x128xbf16>
    %cst_13 = arith.constant dense<0.000000e+00> : vector<256x128xf32>
    %16 = tpu.matmul %1, %15, %cst_13 {dimension_numbers = #tpu.dot_dimension_numbers<[1], [0], [0], [1], [0, 0, 1, 1], [], []>} : vector<256x256xbf16>, vector<256x128xbf16>, vector<256x128xf32> -> vector<256x128xf32>
    %c0_14 = arith.constant 0 : index
    %c0_15 = arith.constant 0 : index
    %c0_16 = arith.constant 0 : index
    %17 = vector.load %arg5[%c0_14, %c0_15, %c0_16] : memref<1x1x128xf32, #tpu.memory_space<vmem>>, vector<1x1x128xf32>
    %18 = vector.shape_cast %17 : vector<1x1x128xf32> to vector<1x128xf32>
    %19 = vector.broadcast %18 : vector<1x128xf32> to vector<256x128xf32>
    %20 = arith.addf %16, %19 : vector<256x128xf32>
    %21 = arith.truncf %20 : vector<256x128xf32> to vector<256x128xbf16>
    %c0_17 = arith.constant 0 : index
    %c0_18 = arith.constant 0 : index
    %c0_19 = arith.constant 0 : index
    %22 = vector.load %arg6[%c0_17, %c0_18, %c0_19] : memref<1x256x128xbf16, #tpu.memory_space<vmem>>, vector<1x256x128xbf16>
    %23 = vector.shape_cast %22 : vector<1x256x128xbf16> to vector<256x128xbf16>
    %24 = vector.shape_cast %21 : vector<256x128xbf16> to vector<1x256x128xbf16>
    tpu.vector_store %arg6[%c0_17, %c0_18, %c0_19], %24 {strides = array<i32>} : memref<1x256x128xbf16, #tpu.memory_space<vmem>>, vector<1x256x128xbf16>,
    return
  }
  func.func @transform_0(%arg0: i32) -> (i32, i32, i32) {
    %c0_i32 = arith.constant 0 : i32
    %c0_i32_0 = arith.constant 0 : i32
    %c0_i32_1 = arith.constant 0 : i32
    return %arg0, %c0_i32, %c0_i32_0 : i32, i32, i32
  }
  func.func @transform_1(%arg0: i32) -> (i32, i32, i32) {
    %c0_i32 = arith.constant 0 : i32
    %c0_i32_0 = arith.constant 0 : i32
    %c0_i32_1 = arith.constant 0 : i32
    return %arg0, %c0_i32, %c0_i32_0 : i32, i32, i32
  }
  func.func @transform_2(%arg0: i32) -> (i32, i32, i32) {
    %c0_i32 = arith.constant 0 : i32
    %c0_i32_0 = arith.constant 0 : i32
    %c0_i32_1 = arith.constant 0 : i32
    return %arg0, %c0_i32, %c0_i32_0 : i32, i32, i32
  }
  func.func @transform_3(%arg0: i32) -> (i32, i32, i32) {
    %c0_i32 = arith.constant 0 : i32
    %c0_i32_0 = arith.constant 0 : i32
    %c0_i32_1 = arith.constant 0 : i32
    return %arg0, %c0_i32, %c0_i32_0 : i32, i32, i32
  }
  func.func @transform_4(%arg0: i32) -> (i32, i32, i32) {
    %c0_i32 = arith.constant 0 : i32
    %c0_i32_0 = arith.constant 0 : i32
    %c0_i32_1 = arith.constant 0 : i32
    return %arg0, %c0_i32, %c0_i32_0 : i32, i32, i32
  }
  func.func @transform_5(%arg0: i32) -> (i32, i32, i32) {
    %c0_i32 = arith.constant 0 : i32
    %c0_i32_0 = arith.constant 0 : i32
    %c0_i32_1 = arith.constant 0 : i32
    return %arg0, %c0_i32, %c0_i32_0 : i32, i32, i32
  }
}

</mosaic_0001>

<llo_original>
// kernel: gcn_apply.1
$region0: #{gcn_apply.1}
  #allocation0 [shape = 'u32[]', space=smem, size = 0x4, offset = 0x4, fixed_abs, tag = 'smem constant byte address 0x4 - core index']
  #allocation1 [shape = 'u32[144,128]{1,0:T(1,128)}', space=vmem, size = 0x12000, scoped, tag = 'internal scratch']
  %s0 = inlined_call_operand.hbm [shape: bf16[2,256,256], index: 0, kind: input, shape index: {}]
  %s1 = inlined_call_operand.hbm [shape: bf16[2,256,128], index: 1, kind: input, shape index: {}]
  %s2 = inlined_call_operand.vmem [shape: f32[2,1,128], index: 2, kind: input, shape index: {}]
  %s3 = inlined_call_operand.hbm [shape: bf16[2,128,128], index: 3, kind: input, shape index: {}]
  %s4 = inlined_call_operand.vmem [shape: f32[2,1,128], index: 4, kind: input, shape index: {}]
  %s5 = inlined_call_operand.vmem [shape: bf16[2,256,128], index: 5, kind: output, shape index: {}]
  %s6 = sld [smem:[#allocation0]]
  $region65: #{gcn_apply.1} parent=0
    _
  %s8 = ssub.s32 1, %s6
  %s9 = scalar_select 0, %s8, %s6
  $region1: #{gcn_apply.1} parent=0
    #allocation2 [shape = 'u8[262144]{0}', space=vmem, size = 0x40000, scoped, tag = 'input window, operand 0']
    #allocation3 [shape = 's32[2]{0}', space=sflag, size = 0x8, scoped, tag = 'scoped memory for gcn_apply.1']
    #allocation4 [shape = 'u8[131072]{0}', space=vmem, size = 0x20000, scoped, tag = 'input window, operand 1']
    #allocation5 [shape = 's32[2]{0}', space=sflag, size = 0x8, scoped, tag = 'scoped memory for gcn_apply.1']
    #allocation6 [shape = 'u8[65536]{0}', space=vmem, size = 0x10000, scoped, tag = 'input window, operand 3']
    %10 = vsyncpa [#allocation3], 0
    %s11 = scalar_lea.sflag [#allocation3], 1
    %12 = vsyncpa %s11, 0
    %13 = vsyncpa [#allocation5], 0
    %s14 = scalar_lea.sflag [#allocation5], 1
    %15 = vsyncpa %s14, 0
    loop: start=0, step=1, limit=4
    $region2: #{gcn_apply.1} parent=1 // loop_pre_header
      _
    $region3: #{gcn_apply.1} parent=1 // loop_header
      %s17 = sphi 0, %s21
      %p18 = scmp.ge.s32.totalorder %s17, 4
      %s27 = sphi 0, %s29
      %s30 = sphi 0, %s27
      %s31 = sphi 0, %s30
      %s47 = sphi 0, %s31
      %s53 = sphi 0, %s55
      %s56 = sphi 0, %s53
      %s57 = sphi 0, %s56
      %s73 = sphi 0, %s57
      %s79 = sphi 0, %s81
      %s82 = sphi 0, %s79
      %s83 = sphi 0, %s82
      %s99 = sphi 0, %s83
      %s105 = sphi 0, %s107
      %s108 = sphi 0, %s105
      %s109 = sphi 0, %s108
      %s125 = sphi 0, %s109
      %s131 = sphi 0, %s133
      %s134 = sphi 0, %s131
      %s135 = sphi 0, %s134
      %s151 = sphi 0, %s135
      %s157 = sphi 0, %s159
      %s160 = sphi 0, %s157
      %s161 = sphi 0, %s160
      %s177 = sphi 0, %s161
    $region4: #{gcn_apply.1} parent=1 // loop_header_branch
      %20 = sbr.rel (%p18) target = $region8
    $region5: #{gcn_apply.1} parent=1 // loop_body
      %s22 = ssub.s32 %s17, 1
      %s23 = ssub.s32 %s17, 2
      %s24 = sadd.s32 %s17, 1
      %s25 = ssub.s32 %s17, %s24
      %p26 = scmp.eq.s32.totalorder %s25, 0
      %s28 = sadd.s32 %s27, 1
      %s29 = scalar_select %p26, %s27, %s28
      %p32 = pneg %p26
      %p33 = scmp.eq.s32.totalorder %s17, 1
      %p34 = por %p32, %p33
      %p35 = scmp.ne.s32.totalorder %s27, %s30
      %p36 = scmp.eq.s32.totalorder %s17, 0
      %p37 = por %p35, %p36
      %p38 = scmp.ne.s32.totalorder %s27, %s30
      %p39 = scmp.eq.s32.totalorder %s22, 1
      %p40 = por %p38, %p39
      %p41 = scmp.ne.s32.totalorder %s30, %s31
      %p42 = scmp.eq.s32.totalorder %s22, 0
      %p43 = por %p41, %p42
      %p44 = scmp.ne.s32.totalorder %s30, %s31
      %p45 = scmp.eq.s32.totalorder %s23, 1
      %p46 = por %p44, %p45
      %p48 = scmp.ne.s32.totalorder %s31, %s47
      %p49 = scmp.eq.s32.totalorder %s23, 0
      %p50 = por %p48, %p49
      %s51 = ssub.s32 %s17, %s24
      %p52 = scmp.eq.s32.totalorder %s51, 0
      %s54 = sadd.s32 %s53, 1
      %s55 = scalar_select %p52, %s53, %s54
      %p58 = pneg %p52
      %p59 = scmp.eq.s32.totalorder %s17, 1
      %p60 = por %p58, %p59
      %p61 = scmp.ne.s32.totalorder %s53, %s56
      %p62 = scmp.eq.s32.totalorder %s17, 0
      %p63 = por %p61, %p62
      %p64 = scmp.ne.s32.totalorder %s53, %s56
      %p65 = scmp.eq.s32.totalorder %s22, 1
      %p66 = por %p64, %p65
      %p67 = scmp.ne.s32.totalorder %s56, %s57
      %p68 = scmp.eq.s32.totalorder %s22, 0
      %p69 = por %p67, %p68
      %p70 = scmp.ne.s32.totalorder %s56, %s57
      %p71 = scmp.eq.s32.totalorder %s23, 1
      %p72 = por %p70, %p71
      %p74 = scmp.ne.s32.totalorder %s57, %s73
      %p75 = scmp.eq.s32.totalorder %s23, 0
      %p76 = por %p74, %p75
      %s77 = ssub.s32 %s17, %s24
      %p78 = scmp.eq.s32.totalorder %s77, 0
      %s80 = sadd.s32 %s79, 1
      %s81 = scalar_select %p78, %s79, %s80
      %p84 = pneg %p78
      %p85 = scmp.eq.s32.totalorder %s17, 1
      %p86 = por %p84, %p85
      %p87 = scmp.ne.s32.totalorder %s79, %s82
      %p88 = scmp.eq.s32.totalorder %s17, 0
      %p89 = por %p87, %p88
      %p90 = scmp.ne.s32.totalorder %s79, %s82
      %p91 = scmp.eq.s32.totalorder %s22, 1
      %p92 = por %p90, %p91
      %p93 = scmp.ne.s32.totalorder %s82, %s83
      %p94 = scmp.eq.s32.totalorder %s22, 0
      %p95 = por %p93, %p94
      %p96 = scmp.ne.s32.totalorder %s82, %s83
      %p97 = scmp.eq.s32.totalorder %s23, 1
      %p98 = por %p96, %p97
      %p100 = scmp.ne.s32.totalorder %s83, %s99
      %p101 = scmp.eq.s32.totalorder %s23, 0
      %p102 = por %p100, %p101
      %s103 = ssub.s32 %s17, %s24
      %p104 = scmp.eq.s32.totalorder %s103, 0
      %s106 = sadd.s32 %s105, 1
      %s107 = scalar_select %p104, %s105, %s106
      %p110 = pneg %p104
      %p111 = scmp.eq.s32.totalorder %s17, 1
      %p112 = por %p110, %p111
      %p113 = scmp.ne.s32.totalorder %s105, %s108
      %p114 = scmp.eq.s32.totalorder %s17, 0
      %p115 = por %p113, %p114
      %p116 = scmp.ne.s32.totalorder %s105, %s108
      %p117 = scmp.eq.s32.totalorder %s22, 1
      %p118 = por %p116, %p117
      %p119 = scmp.ne.s32.totalorder %s108, %s109
      %p120 = scmp.eq.s32.totalorder %s22, 0
      %p121 = por %p119, %p120
      %p122 = scmp.ne.s32.totalorder %s108, %s109
      %p123 = scmp.eq.s32.totalorder %s23, 1
      %p124 = por %p122, %p123
      %p126 = scmp.ne.s32.totalorder %s109, %s125
      %p127 = scmp.eq.s32.totalorder %s23, 0
      %p128 = por %p126, %p127
      %s129 = ssub.s32 %s17, %s24
      %p130 = scmp.eq.s32.totalorder %s129, 0
      %s132 = sadd.s32 %s131, 1
      %s133 = scalar_select %p130, %s131, %s132
      %p136 = pneg %p130
      %p137 = scmp.eq.s32.totalorder %s17, 1
      %p138 = por %p136, %p137
      %p139 = scmp.ne.s32.totalorder %s131, %s134
      %p140 = scmp.eq.s32.totalorder %s17, 0
      %p141 = por %p139, %p140
      %p142 = scmp.ne.s32.totalorder %s131, %s134
      %p143 = scmp.eq.s32.totalorder %s22, 1
      %p144 = por %p142, %p143
      %p145 = scmp.ne.s32.totalorder %s134, %s135
      %p146 = scmp.eq.s32.totalorder %s22, 0
      %p147 = por %p145, %p146
      %p148 = scmp.ne.s32.totalorder %s134, %s135
      %p149 = scmp.eq.s32.totalorder %s23, 1
      %p150 = por %p148, %p149
      %p152 = scmp.ne.s32.totalorder %s135, %s151
      %p153 = scmp.eq.s32.totalorder %s23, 0
      %p154 = por %p152, %p153
      %s155 = ssub.s32 %s17, %s24
      %p156 = scmp.eq.s32.totalorder %s155, 0
      %s158 = sadd.s32 %s157, 1
      %s159 = scalar_select %p156, %s157, %s158
      %p162 = pneg %p156
      %p163 = scmp.eq.s32.totalorder %s17, 1
      %p164 = por %p162, %p163
      %p165 = scmp.ne.s32.totalorder %s157, %s160
      %p166 = scmp.eq.s32.totalorder %s17, 0
      %p167 = por %p165, %p166
      %p168 = scmp.ne.s32.totalorder %s157, %s160
      %p169 = scmp.eq.s32.totalorder %s22, 1
      %p170 = por %p168, %p169
      %p171 = scmp.ne.s32.totalorder %s160, %s161
      %p172 = scmp.eq.s32.totalorder %s22, 0
      %p173 = por %p171, %p172
      %p174 = scmp.ne.s32.totalorder %s160, %s161
      %p175 = scmp.eq.s32.totalorder %s23, 1
      %p176 = por %p174, %p175
      %p178 = scmp.ne.s32.totalorder %s161, %s177
      %p179 = scmp.eq.s32.totalorder %s23, 0
      %p180 = por %p178, %p179
      %p181 = scmp.le.s32.totalorder 1, %s17
      %p182 = scmp.lt.s32.totalorder %s17, 3
      %p183 = pnand %p181, %p182
      %p184 = pneg %p183
      // Predicated region
      $region9: #{gcn_apply.1} parent=5 // pred_check
        _
      $region10: #{gcn_apply.1} parent=5 // pred_check_branch
        %186 = sbr.rel (%p183) target = $region12
      $region11: #{gcn_apply.1} parent=5 // pred_region
        %s187 = ssub.s32 %s17, 1
      $region12: #{gcn_apply.1} parent=5 // pred_fallthru
        _
      %p188 = scmp.lt.s32.totalorder %s17, 2
      // Predicated region
      $region13: #{gcn_apply.1} parent=5 // pred_check
        %p189 = pneg %p188
      $region14: #{gcn_apply.1} parent=5 // pred_check_branch
        %191 = sbr.rel (%p189) target = $region16
      $region15: #{gcn_apply.1} parent=5 // pred_region
        // Predicated region
        $region17: #{gcn_apply.1} parent=15 // pred_check
          %p192 = pneg %p37
        $region18: #{gcn_apply.1} parent=15 // pred_check_branch
          %194 = sbr.rel (%p192) target = $region20
        $region19: #{gcn_apply.1} parent=15 // pred_region
          %s195 = sand.u32 %s27, 1
          %s196 = scalar_lea.sflag [#allocation3], %s195
          %s197 = sand.u32 %s27, 1
          %s198 = smul.addr %s197, 256
          %s199 = scalar_lea.vmem [#allocation2], %s198
          %s201 = ssub.s32 4096, 4096
          %202 = vsyncadd %s196, %s201
          %s203 = smul.addr %s17, 64
          %s204 = smul.addr %s203, 64
          %s205 = scalar_lea.hbm %s0, %s204
          %s206 = sshll.u32 %s199, 4
          %s207 = int_to_ptr.vmem [resolvable:$true] %s206
          %212 = dma.hbm_to_vmem [thread:$0]  %s205, 4096, %s207, %s196, 128, 128, 8
        $region20: #{gcn_apply.1} parent=15 // pred_fallthru
          _
        // Predicated region
        $region21: #{gcn_apply.1} parent=15 // pred_check
          %p213 = pneg %p63
        $region22: #{gcn_apply.1} parent=15 // pred_check_branch
          %215 = sbr.rel (%p213) target = $region24
        $region23: #{gcn_apply.1} parent=15 // pred_region
          %s216 = sand.u32 %s17, 1
          %s217 = scalar_lea.sflag [#allocation5], %s216
          %s218 = sand.u32 %s53, 1
          %s219 = smul.addr %s218, 128
          %s220 = scalar_lea.vmem [#allocation4], %s219
          %s222 = ssub.s32 2048, 2048
          %223 = vsyncadd %s217, %s222
          %s224 = smul.addr %s17, 32
          %s225 = smul.addr %s224, 64
          %s226 = scalar_lea.hbm %s1, %s225
          %s227 = sshll.u32 %s220, 4
          %s228 = int_to_ptr.vmem [resolvable:$true] %s227
          %233 = dma.hbm_to_vmem [thread:$0]  %s226, 2048, %s228, %s217, 64, 64, 4
        $region24: #{gcn_apply.1} parent=15 // pred_fallthru
          _
        // Predicated region
        $region25: #{gcn_apply.1} parent=15 // pred_check
          %p234 = pneg %p89
        $region26: #{gcn_apply.1} parent=15 // pred_check_branch
          %236 = sbr.rel (%p234) target = $region28
        $region27: #{gcn_apply.1} parent=15 // pred_region
          %p237 = scmp.lt.s32.totalorder %s17, 1
          %s238 = scalar_select %p237, %s17, 1
          %s239 = scalar_lea.vmem %s2, %s238
        $region28: #{gcn_apply.1} parent=15 // pred_fallthru
          _
        // Predicated region
        $region29: #{gcn_apply.1} parent=15 // pred_check
          %p240 = pneg %p115
        $region30: #{gcn_apply.1} parent=15 // pred_check_branch
          %242 = sbr.rel (%p240) target = $region32
        $region31: #{gcn_apply.1} parent=15 // pred_region
          %s243 = sand.u32 %s17, 1
          %s244 = scalar_lea.sflag [#allocation5], %s243
          %s245 = sand.u32 %s105, 1
          %s246 = smul.addr %s245, 64
          %s247 = scalar_lea.vmem [#allocation6], %s246
          %s249 = ssub.s32 1024, 1024
          %250 = vsyncadd %s244, %s249
          %s251 = smul.addr %s17, 16
          %s252 = smul.addr %s251, 64
          %s253 = scalar_lea.hbm %s3, %s252
          %s254 = sshll.u32 %s247, 4
          %s255 = int_to_ptr.vmem [resolvable:$true] %s254
          %260 = dma.hbm_to_vmem [thread:$0]  %s253, 1024, %s255, %s244, 64, 64, 4
        $region32: #{gcn_apply.1} parent=15 // pred_fallthru
          _
        // Predicated region
        $region33: #{gcn_apply.1} parent=15 // pred_check
          %p261 = pneg %p141
        $region34: #{gcn_apply.1} parent=15 // pred_check_branch
          %263 = sbr.rel (%p261) target = $region36
        $region35: #{gcn_apply.1} parent=15 // pred_region
          %p264 = scmp.lt.s32.totalorder %s17, 1
          %s265 = scalar_select %p264, %s17, 1
          %s266 = scalar_lea.vmem %s4, %s265
        $region36: #{gcn_apply.1} parent=15 // pred_fallthru
          _
      $region16: #{gcn_apply.1} parent=5 // pred_fallthru
        _
      %p267 = scmp.le.s32.totalorder 1, %s17
      %p268 = scmp.lt.s32.totalorder %s17, 3
      %p269 = pnand %p267, %p268
      %p270 = pneg %p269
      // Predicated region
      $region37: #{gcn_apply.1} parent=5 // pred_check
        _
      $region38: #{gcn_apply.1} parent=5 // pred_check_branch
        %272 = sbr.rel (%p269) target = $region40
      $region39: #{gcn_apply.1} parent=5 // pred_region
        %s273 = ssub.s32 %s17, 1
        %s274 = sand.u32 %s30, 1
        %s275 = scalar_lea.sflag [#allocation3], %s274
        %s276 = sand.u32 %s30, 1
        %s277 = smul.addr %s276, 256
        %s278 = scalar_lea.vmem [#allocation2], %s277
        // Predicated region
        $region41: #{gcn_apply.1} parent=39 // pred_check
          %p279 = pneg %p43
        $region42: #{gcn_apply.1} parent=39 // pred_check_branch
          %281 = sbr.rel (%p279) target = $region44
        $region43: #{gcn_apply.1} parent=39 // pred_region
          %282 = dma.done %s275, 4096
        $region44: #{gcn_apply.1} parent=39 // pred_fallthru
          _
        %s283 = sand.u32 %s22, 1
        %s284 = scalar_lea.sflag [#allocation5], %s283
        %s285 = sand.u32 %s56, 1
        %s286 = smul.addr %s285, 128
        %s287 = scalar_lea.vmem [#allocation4], %s286
        // Predicated region
        $region45: #{gcn_apply.1} parent=39 // pred_check
          %p288 = pneg %p69
        $region46: #{gcn_apply.1} parent=39 // pred_check_branch
          %290 = sbr.rel (%p288) target = $region48
        $region47: #{gcn_apply.1} parent=39 // pred_region
          %291 = dma.done %s284, 2048
        $region48: #{gcn_apply.1} parent=39 // pred_fallthru
          _
        %s292 = sand.u32 %s22, 1
        %s293 = scalar_lea.sflag [#allocation5], %s292
        %s294 = sand.u32 %s108, 1
        %s295 = smul.addr %s294, 64
        %s296 = scalar_lea.vmem [#allocation6], %s295
        // Predicated region
        $region49: #{gcn_apply.1} parent=39 // pred_check
          %p297 = pneg %p121
        $region50: #{gcn_apply.1} parent=39 // pred_check_branch
          %299 = sbr.rel (%p297) target = $region52
        $region51: #{gcn_apply.1} parent=39 // pred_region
          %300 = dma.done %s293, 1024
        $region52: #{gcn_apply.1} parent=39 // pred_fallthru
          _
        %s301 = sand.u32 %s30, 1
        %s302 = scalar_lea.sflag [#allocation3], %s301
        %s303 = sand.u32 %s30, 1
        %s304 = smul.addr %s303, 256
        %s305 = scalar_lea.vmem [#allocation2], %s304
        %p306 = pneg %p43
        %p307 = pneg %p40
        %s308 = sand.u32 %s22, 1
        %s309 = scalar_lea.sflag [#allocation5], %s308
        %s310 = sand.u32 %s56, 1
        %s311 = smul.addr %s310, 128
        %s312 = scalar_lea.vmem [#allocation4], %s311
        %p313 = pneg %p69
        %p314 = pneg %p66
        %p315 = scmp.lt.s32.totalorder %s22, 1
        %s316 = scalar_select %p315, %s22, 1
        %s317 = scalar_lea.vmem %s2, %s316
        %p318 = pneg %p95
        %p319 = pneg %p92
        %s320 = sand.u32 %s22, 1
        %s321 = scalar_lea.sflag [#allocation5], %s320
        %s322 = sand.u32 %s108, 1
        %s323 = smul.addr %s322, 64
        %s324 = scalar_lea.vmem [#allocation6], %s323
        %p325 = pneg %p121
        %p326 = pneg %p118
        %p327 = scmp.lt.s32.totalorder %s22, 1
        %s328 = scalar_select %p327, %s22, 1
        %s329 = scalar_lea.vmem %s4, %s328
        %p330 = pneg %p147
        %p331 = pneg %p144
        %p332 = pneg %p173
        %p333 = pneg %p170
        %p334 = scmp.lt.s32.totalorder %s22, 1
        %s335 = scalar_select %p334, %s22, 1
        %s336 = smul.addr %s335, 32
        %s337 = smul.addr %s336, 4
        %s338 = scalar_lea.vmem %s5, %s337
        %p339 = scmp.lt.s32.totalorder %s22, 1
        %s340 = scalar_select %p339, %s22, 1
        %s341 = scalar_lea.vmem %s2, %s340
        %p342 = scmp.lt.s32.totalorder %s22, 1
        %s343 = scalar_select %p342, %s22, 1
        %s344 = scalar_lea.vmem %s4, %s343
        %p345 = scmp.lt.s32.totalorder %s22, 1
        %s346 = scalar_select %p345, %s22, 1
        %s347 = smul.addr %s346, 32
        %s348 = smul.addr %s347, 4
        %s349 = scalar_lea.vmem %s5, %s348
        %v351 = vld [vmem:[%s278] sm:$0xff]
        %v352 = vld [vmem:[%s278 + $0x8] sm:$0xff]
        %v353 = vld [vmem:[%s278 + $0x10] sm:$0xff]
        %v354 = vld [vmem:[%s278 + $0x18] sm:$0xff]
        %v355 = vld [vmem:[%s278 + $0x20] sm:$0xff]
        %v356 = vld [vmem:[%s278 + $0x28] sm:$0xff]
        %v357 = vld [vmem:[%s278 + $0x30] sm:$0xff]
        %v358 = vld [vmem:[%s278 + $0x38] sm:$0xff]
        %v359 = vld [vmem:[%s278 + $0x40] sm:$0xff]
        %v360 = vld [vmem:[%s278 + $0x48] sm:$0xff]
        %v361 = vld [vmem:[%s278 + $0x50] sm:$0xff]
        %v362 = vld [vmem:[%s278 + $0x58] sm:$0xff]
        %v363 = vld [vmem:[%s278 + $0x60] sm:$0xff]
        %v364 = vld [vmem:[%s278 + $0x68] sm:$0xff]
        %v365 = vld [vmem:[%s278 + $0x70] sm:$0xff]
        %v366 = vld [vmem:[%s278 + $0x78] sm:$0xff]
        %v367 = vld [vmem:[%s278 + $0x80] sm:$0xff]
        %v368 = vld [vmem:[%s278 + $0x88] sm:$0xff]
        %v369 = vld [vmem:[%s278 + $0x90] sm:$0xff]
        %v370 = vld [vmem:[%s278 + $0x98] sm:$0xff]
        %v371 = vld [vmem:[%s278 + $0xa0] sm:$0xff]
        %v372 = vld [vmem:[%s278 + $0xa8] sm:$0xff]
        %v373 = vld [vmem:[%s278 + $0xb0] sm:$0xff]
        %v374 = vld [vmem:[%s278 + $0xb8] sm:$0xff]
        %v375 = vld [vmem:[%s278 + $0xc0] sm:$0xff]
        %v376 = vld [vmem:[%s278 + $0xc8] sm:$0xff]
        %v377 = vld [vmem:[%s278 + $0xd0] sm:$0xff]
        %v378 = vld [vmem:[%s278 + $0xd8] sm:$0xff]
        %v379 = vld [vmem:[%s278 + $0xe0] sm:$0xff]
        %v380 = vld [vmem:[%s278 + $0xe8] sm:$0xff]
        %v381 = vld [vmem:[%s278 + $0xf0] sm:$0xff]
        %v382 = vld [vmem:[%s278 + $0xf8] sm:$0xff]
        %v383 = vld [vmem:[%s287] sm:$0xf]
        %v384 = vld [vmem:[%s287 + $0x4] sm:$0xf]
        %v385 = vld [vmem:[%s287 + $0x8] sm:$0xf]
        %v386 = vld [vmem:[%s287 + $0xc] sm:$0xf]
        %v387 = vld [vmem:[%s287 + $0x10] sm:$0xf]
        %v388 = vld [vmem:[%s287 + $0x14] sm:$0xf]
        %v389 = vld [vmem:[%s287 + $0x18] sm:$0xf]
        %v390 = vld [vmem:[%s287 + $0x1c] sm:$0xf]
        %v391 = vld [vmem:[%s287 + $0x20] sm:$0xf]
        %v392 = vld [vmem:[%s287 + $0x24] sm:$0xf]
        %v393 = vld [vmem:[%s287 + $0x28] sm:$0xf]
        %v394 = vld [vmem:[%s287 + $0x2c] sm:$0xf]
        %v395 = vld [vmem:[%s287 + $0x30] sm:$0xf]
        %v396 = vld [vmem:[%s287 + $0x34] sm:$0xf]
        %v397 = vld [vmem:[%s287 + $0x38] sm:$0xf]
        %v398 = vld [vmem:[%s287 + $0x3c] sm:$0xf]
        %v399 = vld [vmem:[%s287 + $0x40] sm:$0xf]
        %v400 = vld [vmem:[%s287 + $0x44] sm:$0xf]
        %v401 = vld [vmem:[%s287 + $0x48] sm:$0xf]
        %v402 = vld [vmem:[%s287 + $0x4c] sm:$0xf]
        %v403 = vld [vmem:[%s287 + $0x50] sm:$0xf]
        %v404 = vld [vmem:[%s287 + $0x54] sm:$0xf]
        %v405 = vld [vmem:[%s287 + $0x58] sm:$0xf]
        %v406 = vld [vmem:[%s287 + $0x5c] sm:$0xf]
        %v407 = vld [vmem:[%s287 + $0x60] sm:$0xf]
        %v408 = vld [vmem:[%s287 + $0x64] sm:$0xf]
        %v409 = vld [vmem:[%s287 + $0x68] sm:$0xf]
        %v410 = vld [vmem:[%s287 + $0x6c] sm:$0xf]
        %v411 = vld [vmem:[%s287 + $0x70] sm:$0xf]
        %v412 = vld [vmem:[%s287 + $0x74] sm:$0xf]
        %v413 = vld [vmem:[%s287 + $0x78] sm:$0xf]
        %v414 = vld [vmem:[%s287 + $0x7c] sm:$0xf]
        %v415 = vld [vmem:[%s341] sm:$0x1]
        %v417 = vlaneseq
        %v418 = vshrl.u32 %v417, 7
        %v419 = vsub.s32 0, %v418
        %v420 = vrot.slane %v415, %v419
        %v454 = vunpack.c.l.b16 %v351
        %v455 = vunpack.c.h.b16 %v351
        %v456 = vunpack.c.l.b16 %v352
        %v457 = vunpack.c.h.b16 %v352
        %v458 = vunpack.c.l.b16 %v353
        %v459 = vunpack.c.h.b16 %v353
        %v460 = vunpack.c.l.b16 %v354
        %v461 = vunpack.c.h.b16 %v354
        %v462 = vunpack.c.l.b16 %v355
        %v463 = vunpack.c.h.b16 %v355
        %v464 = vunpack.c.l.b16 %v356
        %v465 = vunpack.c.h.b16 %v356
        %v466 = vunpack.c.l.b16 %v357
        %v467 = vunpack.c.h.b16 %v357
        %v468 = vunpack.c.l.b16 %v358
        %v469 = vunpack.c.h.b16 %v358
        %v470 = vunpack.c.l.b16 %v359
        %v471 = vunpack.c.h.b16 %v359
        %v472 = vunpack.c.l.b16 %v360
        %v473 = vunpack.c.h.b16 %v360
        %v474 = vunpack.c.l.b16 %v361
        %v475 = vunpack.c.h.b16 %v361
        %v476 = vunpack.c.l.b16 %v362
        %v477 = vunpack.c.h.b16 %v362
        %v478 = vunpack.c.l.b16 %v363
        %v479 = vunpack.c.h.b16 %v363
        %v480 = vunpack.c.l.b16 %v364
        %v481 = vunpack.c.h.b16 %v364
        %v482 = vunpack.c.l.b16 %v365
        %v483 = vunpack.c.h.b16 %v365
        %v484 = vunpack.c.l.b16 %v366
        %v485 = vunpack.c.h.b16 %v366
        %v486 = vunpack.c.l.b16 %v367
        %v487 = vunpack.c.h.b16 %v367
        %v488 = vunpack.c.l.b16 %v368
        %v489 = vunpack.c.h.b16 %v368
        %v490 = vunpack.c.l.b16 %v369
        %v491 = vunpack.c.h.b16 %v369
        %v492 = vunpack.c.l.b16 %v370
        %v493 = vunpack.c.h.b16 %v370
        %v494 = vunpack.c.l.b16 %v371
        %v495 = vunpack.c.h.b16 %v371
        %v496 = vunpack.c.l.b16 %v372
        %v497 = vunpack.c.h.b16 %v372
        %v498 = vunpack.c.l.b16 %v373
        %v499 = vunpack.c.h.b16 %v373
        %v500 = vunpack.c.l.b16 %v374
        %v501 = vunpack.c.h.b16 %v374
        %v502 = vunpack.c.l.b16 %v375
        %v503 = vunpack.c.h.b16 %v375
        %v504 = vunpack.c.l.b16 %v376
        %v505 = vunpack.c.h.b16 %v376
        %v506 = vunpack.c.l.b16 %v377
        %v507 = vunpack.c.h.b16 %v377
        %v508 = vunpack.c.l.b16 %v378
        %v509 = vunpack.c.h.b16 %v378
        %v510 = vunpack.c.l.b16 %v379
        %v511 = vunpack.c.h.b16 %v379
        %v512 = vunpack.c.l.b16 %v380
        %v513 = vunpack.c.h.b16 %v380
        %v514 = vunpack.c.l.b16 %v381
        %v515 = vunpack.c.h.b16 %v381
        %v516 = vunpack.c.l.b16 %v382
        %v517 = vunpack.c.h.b16 %v382
        %v518 = vpack.c.b16 %v456, %v454
        %v519 = vpack.c.b16 %v457, %v455
        %v520 = vpack.c.b16 %v460, %v458
        %v521 = vpack.c.b16 %v461, %v459
        %v522 = vpack.c.b16 %v464, %v462
        %v523 = vpack.c.b16 %v465, %v463
        %v524 = vpack.c.b16 %v468, %v466
        %v525 = vpack.c.b16 %v469, %v467
        %v526 = vpack.c.b16 %v472, %v470
        %v527 = vpack.c.b16 %v473, %v471
        %v528 = vpack.c.b16 %v476, %v474
        %v529 = vpack.c.b16 %v477, %v475
        %v530 = vpack.c.b16 %v480, %v478
        %v531 = vpack.c.b16 %v481, %v479
        %v532 = vpack.c.b16 %v484, %v482
        %v533 = vpack.c.b16 %v485, %v483
        %v534 = vpack.c.b16 %v488, %v486
        %v535 = vpack.c.b16 %v489, %v487
        %v536 = vpack.c.b16 %v492, %v490
        %v537 = vpack.c.b16 %v493, %v491
        %v538 = vpack.c.b16 %v496, %v494
        %v539 = vpack.c.b16 %v497, %v495
        %v540 = vpack.c.b16 %v500, %v498
        %v541 = vpack.c.b16 %v501, %v499
        %v542 = vpack.c.b16 %v504, %v502
        %v543 = vpack.c.b16 %v505, %v503
        %v544 = vpack.c.b16 %v508, %v506
        %v545 = vpack.c.b16 %v509, %v507
        %v546 = vpack.c.b16 %v512, %v510
        %v547 = vpack.c.b16 %v513, %v511
        %v548 = vpack.c.b16 %v516, %v514
        %v549 = vpack.c.b16 %v517, %v515
        %v614 = vunpack.c.l.b16 %v383
        %v615 = vunpack.c.l.b16 %v384
        %v616 = vunpack.c.l.b16 %v385
        %v617 = vunpack.c.l.b16 %v386
        %v618 = vunpack.c.l.b16 %v387
        %v619 = vunpack.c.l.b16 %v388
        %v620 = vunpack.c.l.b16 %v389
        %v621 = vunpack.c.l.b16 %v390
        %v622 = vunpack.c.l.b16 %v391
        %v623 = vunpack.c.l.b16 %v392
        %v624 = vunpack.c.l.b16 %v393
        %v625 = vunpack.c.l.b16 %v394
        %v626 = vunpack.c.l.b16 %v395
        %v627 = vunpack.c.l.b16 %v396
        %v628 = vunpack.c.l.b16 %v397
        %v629 = vunpack.c.l.b16 %v398
        %v630 = vunpack.c.l.b16 %v399
        %v631 = vunpack.c.l.b16 %v400
        %v632 = vunpack.c.l.b16 %v401
        %v633 = vunpack.c.l.b16 %v402
        %v634 = vunpack.c.l.b16 %v403
        %v635 = vunpack.c.l.b16 %v404
        %v636 = vunpack.c.l.b16 %v405
        %v637 = vunpack.c.l.b16 %v406
        %v638 = vunpack.c.l.b16 %v407
        %v639 = vunpack.c.l.b16 %v408
        %v640 = vunpack.c.l.b16 %v409
        %v641 = vunpack.c.l.b16 %v410
        %v642 = vunpack.c.l.b16 %v411
        %v643 = vunpack.c.l.b16 %v412
        %v644 = vunpack.c.l.b16 %v413
        %v645 = vunpack.c.l.b16 %v414
        %v646 = vpack.c.b16 %v615, %v614
        %v647 = vpack.c.b16 %v617, %v616
        %v648 = vpack.c.b16 %v619, %v618
        %v649 = vpack.c.b16 %v621, %v620
        %v650 = vpack.c.b16 %v623, %v622
        %v651 = vpack.c.b16 %v625, %v624
        %v652 = vpack.c.b16 %v627, %v626
        %v653 = vpack.c.b16 %v629, %v628
        %v654 = vpack.c.b16 %v631, %v630
        %v655 = vpack.c.b16 %v633, %v632
        %v656 = vpack.c.b16 %v635, %v634
        %v657 = vpack.c.b16 %v637, %v636
        %v658 = vpack.c.b16 %v639, %v638
        %v659 = vpack.c.b16 %v641, %v640
        %v660 = vpack.c.b16 %v643, %v642
        %v661 = vpack.c.b16 %v645, %v644
        %678 = vmatprep.subr.bf16.mxu0 0
        %679 = vmatpush1.bf16.msra.mxu0 %v646
        %680 = vmatprep.subr.bf16.mxu0 0
        %681 = vmatpush1.bf16.msra.mxu0 %v647
        %682 = vmatprep.subr.bf16.mxu0 0
        %683 = vmatpush1.bf16.msra.mxu0 %v648
        %684 = vmatprep.subr.bf16.mxu0 0
        %685 = vmatpush1.bf16.msra.mxu0 %v649
        %686 = vmatprep.subr.bf16.mxu0 0
        %687 = vmatpush1.bf16.msra.mxu0 %v650
        %688 = vmatprep.subr.bf16.mxu0 0
        %689 = vmatpush1.bf16.msra.mxu0 %v651
        %690 = vmatprep.subr.bf16.mxu0 0
        %691 = vmatpush1.bf16.msra.mxu0 %v652
        %692 = vmatprep.subr.bf16.mxu0 0
        %693 = vmatpush1.bf16.msra.mxu0 %v653
        %694 = vmatprep.subr.bf16.mxu0 0
        %695 = vmatpush1.bf16.msra.mxu0 %v654
        %696 = vmatprep.subr.bf16.mxu0 0
        %697 = vmatpush1.bf16.msra.mxu0 %v655
        %698 = vmatprep.subr.bf16.mxu0 0
        %699 = vmatpush1.bf16.msra.mxu0 %v656
        %700 = vmatprep.subr.bf16.mxu0 0
        %701 = vmatpush1.bf16.msra.mxu0 %v657
        %702 = vmatprep.subr.bf16.mxu0 0
        %703 = vmatpush1.bf16.msra.mxu0 %v658
        %704 = vmatprep.subr.bf16.mxu0 0
        %705 = vmatpush1.bf16.msra.mxu0 %v659
        %706 = vmatprep.subr.bf16.mxu0 0
        %707 = vmatpush1.bf16.msra.mxu0 %v660
        %708 = vmatprep.subr.bf16.mxu0 0
        %709 = vmatpush1.bf16.msra.mxu0 %v661
        %710 = vmatprep.mubr.bf16.mxu0 %v519
        %711 = vmatmul.mubr.bf16.gmra.mrb[0].mxu0 %v518
        %v712 = vpop.f32.mrb[0].mxu0
        %v713 = vadd.f32 %v420, %v712
        %v714 = vpop.f32.mrb[0].mxu0
        %v715 = vpop.f32.mrb[0].mxu0
        %v716 = vadd.f32 %v420, %v715
        %v717 = vpop.f32.mrb[0].mxu0
        %718 = vmatprep.mubr.bf16.mxu0 %v521
        %719 = vmatmul.mubr.bf16.gmra.mrb[0].mxu0 %v520
        %v720 = vpop.f32.mrb[0].mxu0
        %v721 = vadd.f32 %v420, %v720
        %v722 = vpop.f32.mrb[0].mxu0
        %v723 = vpop.f32.mrb[0].mxu0
        %v724 = vadd.f32 %v420, %v723
        %v725 = vpop.f32.mrb[0].mxu0
        %726 = vmatprep.mubr.bf16.mxu0 %v523
        %727 = vmatmul.mubr.bf16.gmra.mrb[0].mxu0 %v522
        %v728 = vpop.f32.mrb[0].mxu0
        %v729 = vadd.f32 %v420, %v728
        %v730 = vpop.f32.mrb[0].mxu0
        %v731 = vpop.f32.mrb[0].mxu0
        %v732 = vadd.f32 %v420, %v731
        %v733 = vpop.f32.mrb[0].mxu0
        %734 = vmatprep.mubr.bf16.mxu0 %v525
        %735 = vmatmul.mubr.bf16.gmra.mrb[0].mxu0 %v524
        %v736 = vpop.f32.mrb[0].mxu0
        %v737 = vadd.f32 %v420, %v736
        %v738 = vpop.f32.mrb[0].mxu0
        %v739 = vpop.f32.mrb[0].mxu0
        %v740 = vadd.f32 %v420, %v739
        %v741 = vpop.f32.mrb[0].mxu0
        %742 = vmatprep.mubr.bf16.mxu0 %v527
        %743 = vmatmul.mubr.bf16.gmra.mrb[0].mxu0 %v526
        %v744 = vpop.f32.mrb[0].mxu0
        %v745 = vadd.f32 %v420, %v744
        %v746 = vpop.f32.mrb[0].mxu0
        %v747 = vpop.f32.mrb[0].mxu0
        %v748 = vadd.f32 %v420, %v747
        %v749 = vpop.f32.mrb[0].mxu0
        %750 = vmatprep.mubr.bf16.mxu0 %v529
        %751 = vmatmul.mubr.bf16.gmra.mrb[0].mxu0 %v528
        %v752 = vpop.f32.mrb[0].mxu0
        %v753 = vadd.f32 %v420, %v752
        %v754 = vpop.f32.mrb[0].mxu0
        %v755 = vpop.f32.mrb[0].mxu0
        %v756 = vadd.f32 %v420, %v755
        %v757 = vpop.f32.mrb[0].mxu0
        %758 = vmatprep.mubr.bf16.mxu0 %v531
        %759 = vmatmul.mubr.bf16.gmra.mrb[0].mxu0 %v530
        %v760 = vpop.f32.mrb[0].mxu0
        %v761 = vadd.f32 %v420, %v760
        %v762 = vpop.f32.mrb[0].mxu0
        %v763 = vpop.f32.mrb[0].mxu0
        %v764 = vadd.f32 %v420, %v763
        %v765 = vpop.f32.mrb[0].mxu0
        %766 = vmatprep.mubr.bf16.mxu0 %v533
        %767 = vmatmul.mubr.bf16.gmra.mrb[0].mxu0 %v532
        %v768 = vpop.f32.mrb[0].mxu0
        %v769 = vadd.f32 %v420, %v768
        %v770 = vpop.f32.mrb[0].mxu0
        %v771 = vpop.f32.mrb[0].mxu0
        %v772 = vadd.f32 %v420, %v771
        %v773 = vpop.f32.mrb[0].mxu0
        %774 = vmatprep.mubr.bf16.mxu0 %v535
        %775 = vmatmul.mubr.bf16.gmra.mrb[0].mxu0 %v534
        %v776 = vpop.f32.mrb[0].mxu0
        %v777 = vadd.f32 %v420, %v776
        %v778 = vpop.f32.mrb[0].mxu0
        %v779 = vpop.f32.mrb[0].mxu0
        %v780 = vadd.f32 %v420, %v779
        %v781 = vpop.f32.mrb[0].mxu0
        %782 = vmatprep.mubr.bf16.mxu0 %v537
        %783 = vmatmul.mubr.bf16.gmra.mrb[0].mxu0 %v536
        %v784 = vpop.f32.mrb[0].mxu0
        %v785 = vadd.f32 %v420, %v784
        %v786 = vpop.f32.mrb[0].mxu0
        %v787 = vpop.f32.mrb[0].mxu0
        %v788 = vadd.f32 %v420, %v787
        %v789 = vpop.f32.mrb[0].mxu0
        %790 = vmatprep.mubr.bf16.mxu0 %v539
        %791 = vmatmul.mubr.bf16.gmra.mrb[0].mxu0 %v538
        %v792 = vpop.f32.mrb[0].mxu0
        %v793 = vadd.f32 %v420, %v792
        %v794 = vpop.f32.mrb[0].mxu0
        %v795 = vpop.f32.mrb[0].mxu0
        %v796 = vadd.f32 %v420, %v795
        %v797 = vpop.f32.mrb[0].mxu0
        %798 = vmatprep.mubr.bf16.mxu0 %v541
        %799 = vmatmul.mubr.bf16.gmra.mrb[0].mxu0 %v540
        %v800 = vpop.f32.mrb[0].mxu0
        %v801 = vadd.f32 %v420, %v800
        %v802 = vpop.f32.mrb[0].mxu0
        %v803 = vpop.f32.mrb[0].mxu0
        %v804 = vadd.f32 %v420, %v803
        %v805 = vpop.f32.mrb[0].mxu0
        %806 = vmatprep.mubr.bf16.mxu0 %v543
        %807 = vmatmul.mubr.bf16.gmra.mrb[0].mxu0 %v542
        %v808 = vpop.f32.mrb[0].mxu0
        %v809 = vadd.f32 %v420, %v808
        %v810 = vpop.f32.mrb[0].mxu0
        %v811 = vpop.f32.mrb[0].mxu0
        %v812 = vadd.f32 %v420, %v811
        %v813 = vpop.f32.mrb[0].mxu0
        %814 = vmatprep.mubr.bf16.mxu0 %v545
        %815 = vmatmul.mubr.bf16.gmra.mrb[0].mxu0 %v544
        %v816 = vpop.f32.mrb[0].mxu0
        %v817 = vadd.f32 %v420, %v816
        %v818 = vpop.f32.mrb[0].mxu0
        %v819 = vpop.f32.mrb[0].mxu0
        %v820 = vadd.f32 %v420, %v819
        %v821 = vpop.f32.mrb[0].mxu0
        %822 = vmatprep.mubr.bf16.mxu0 %v547
        %823 = vmatmul.mubr.bf16.gmra.mrb[0].mxu0 %v546
        %v824 = vpop.f32.mrb[0].mxu0
        %v825 = vadd.f32 %v420, %v824
        %v826 = vpop.f32.mrb[0].mxu0
        %v827 = vpop.f32.mrb[0].mxu0
        %v828 = vadd.f32 %v420, %v827
        %v829 = vpop.f32.mrb[0].mxu0
        %830 = vmatprep.mubr.bf16.mxu0 %v549
        %831 = vmatmul.mubr.bf16.gmra.mrb[0].mxu0 %v548
        %v832 = vpop.f32.mrb[0].mxu0
        %v833 = vadd.f32 %v420, %v832
        %v834 = vpop.f32.mrb[0].mxu0
        %v835 = vpop.f32.mrb[0].mxu0
        %v836 = vadd.f32 %v420, %v835
        %v837 = vpop.f32.mrb[0].mxu0
        %838 = vdwg.mxu0
        %v839 = vmax.f32 %v713, 0.0
        %v840 = vmax.f32 %v716, 0.0
        %v841 = vmax.f32 %v721, 0.0
        %v842 = vmax.f32 %v724, 0.0
        %v843 = vmax.f32 %v729, 0.0
        %v844 = vmax.f32 %v732, 0.0
        %v845 = vmax.f32 %v737, 0.0
        %v846 = vmax.f32 %v740, 0.0
        %v847 = vmax.f32 %v745, 0.0
        %v848 = vmax.f32 %v748, 0.0
        %v849 = vmax.f32 %v753, 0.0
        %v850 = vmax.f32 %v756, 0.0
        %v851 = vmax.f32 %v761, 0.0
        %v852 = vmax.f32 %v764, 0.0
        %v853 = vmax.f32 %v769, 0.0
        %v854 = vmax.f32 %v772, 0.0
        %v855 = vmax.f32 %v777, 0.0
        %v856 = vmax.f32 %v780, 0.0
        %v857 = vmax.f32 %v785, 0.0
        %v858 = vmax.f32 %v788, 0.0
        %v859 = vmax.f32 %v793, 0.0
        %v860 = vmax.f32 %v796, 0.0
        %v861 = vmax.f32 %v801, 0.0
        %v862 = vmax.f32 %v804, 0.0
        %v863 = vmax.f32 %v809, 0.0
        %v864 = vmax.f32 %v812, 0.0
        %v865 = vmax.f32 %v817, 0.0
        %v866 = vmax.f32 %v820, 0.0
        %v867 = vmax.f32 %v825, 0.0
        %v868 = vmax.f32 %v828, 0.0
        %v869 = vmax.f32 %v833, 0.0
        %v870 = vmax.f32 %v836, 0.0
        %v871 = vpack.c.bf16 %v840, %v839
        %v872 = vpack.c.bf16 %v842, %v841
        %v873 = vpack.c.bf16 %v844, %v843
        %v874 = vpack.c.bf16 %v846, %v845
        %v875 = vpack.c.bf16 %v848, %v847
        %v876 = vpack.c.bf16 %v850, %v849
        %v877 = vpack.c.bf16 %v852, %v851
        %v878 = vpack.c.bf16 %v854, %v853
        %v879 = vpack.c.bf16 %v856, %v855
        %v880 = vpack.c.bf16 %v858, %v857
        %v881 = vpack.c.bf16 %v860, %v859
        %v882 = vpack.c.bf16 %v862, %v861
        %v883 = vpack.c.bf16 %v864, %v863
        %v884 = vpack.c.bf16 %v866, %v865
        %v885 = vpack.c.bf16 %v868, %v867
        %v886 = vpack.c.bf16 %v870, %v869
        %v887 = vld [vmem:[%s296] sm:$0xf]
        %v888 = vld [vmem:[%s296 + $0x4] sm:$0xf]
        %v889 = vld [vmem:[%s296 + $0x8] sm:$0xf]
        %v890 = vld [vmem:[%s296 + $0xc] sm:$0xf]
        %v891 = vld [vmem:[%s296 + $0x10] sm:$0xf]
        %v892 = vld [vmem:[%s296 + $0x14] sm:$0xf]
        %v893 = vld [vmem:[%s296 + $0x18] sm:$0xf]
        %v894 = vld [vmem:[%s296 + $0x1c] sm:$0xf]
        %v895 = vld [vmem:[%s296 + $0x20] sm:$0xf]
        %v896 = vld [vmem:[%s296 + $0x24] sm:$0xf]
        %v897 = vld [vmem:[%s296 + $0x28] sm:$0xf]
        %v898 = vld [vmem:[%s296 + $0x2c] sm:$0xf]
        %v899 = vld [vmem:[%s296 + $0x30] sm:$0xf]
        %v900 = vld [vmem:[%s296 + $0x34] sm:$0xf]
        %v901 = vld [vmem:[%s296 + $0x38] sm:$0xf]
        %v902 = vld [vmem:[%s296 + $0x3c] sm:$0xf]
        %v919 = vunpack.c.l.b16 %v887
        %v920 = vunpack.c.l.b16 %v888
        %v921 = vunpack.c.l.b16 %v889
        %v922 = vunpack.c.l.b16 %v890
        %v923 = vunpack.c.l.b16 %v891
        %v924 = vunpack.c.l.b16 %v892
        %v925 = vunpack.c.l.b16 %v893
        %v926 = vunpack.c.l.b16 %v894
        %v927 = vunpack.c.l.b16 %v895
        %v928 = vunpack.c.l.b16 %v896
        %v929 = vunpack.c.l.b16 %v897
        %v930 = vunpack.c.l.b16 %v898
        %v931 = vunpack.c.l.b16 %v899
        %v932 = vunpack.c.l.b16 %v900
        %v933 = vunpack.c.l.b16 %v901
        %v934 = vunpack.c.l.b16 %v902
        %v935 = vpack.c.b16 %v920, %v919
        %v936 = vpack.c.b16 %v922, %v921
        %v937 = vpack.c.b16 %v924, %v923
        %v938 = vpack.c.b16 %v926, %v925
        %v939 = vpack.c.b16 %v928, %v927
        %v940 = vpack.c.b16 %v930, %v929
        %v941 = vpack.c.b16 %v932, %v931
        %v942 = vpack.c.b16 %v934, %v933
        %951 = vmatprep.subr.bf16.mxu0 0
        %952 = vmatpush1.bf16.msra.mxu0 %v935
        %953 = vmatprep.subr.bf16.mxu0 0
        %954 = vmatpush1.bf16.msra.mxu0 %v936
        %955 = vmatprep.subr.bf16.mxu0 0
        %956 = vmatpush1.bf16.msra.mxu0 %v937
        %957 = vmatprep.subr.bf16.mxu0 0
        %958 = vmatpush1.bf16.msra.mxu0 %v938
        %959 = vmatprep.subr.bf16.mxu0 0
        %960 = vmatpush1.bf16.msra.mxu0 %v939
        %961 = vmatprep.subr.bf16.mxu0 0
        %962 = vmatpush1.bf16.msra.mxu0 %v940
        %963 = vmatprep.subr.bf16.mxu0 0
        %964 = vmatpush1.bf16.msra.mxu0 %v941
        %965 = vmatprep.subr.bf16.mxu0 0
        %966 = vmatpush1.bf16.msra.mxu0 %v942
        %967 = vmatprep.subr.bf16.mxu0 0
        %968 = vmatpush1.bf16.msra.mxu0 0
        %969 = vmatprep.subr.bf16.mxu0 0
        %970 = vmatpush1.bf16.msra.mxu0 0
        %971 = vmatprep.subr.bf16.mxu0 0
        %972 = vmatpush1.bf16.msra.mxu0 0
        %973 = vmatprep.subr.bf16.mxu0 0
        %974 = vmatpush1.bf16.msra.mxu0 0
        %975 = vmatprep.subr.bf16.mxu0 0
        %976 = vmatpush1.bf16.msra.mxu0 0
        %977 = vmatprep.subr.bf16.mxu0 0
        %978 = vmatpush1.bf16.msra.mxu0 0
        %979 = vmatprep.subr.bf16.mxu0 0
        %980 = vmatpush1.bf16.msra.mxu0 0
        %981 = vmatprep.subr.bf16.mxu0 0
        %982 = vmatpush1.bf16.msra.mxu0 0
        %983 = vmatprep.mubr.bf16.mxu0 0
        %984 = vmatmul.mubr.bf16.gmra.mrb[0].mxu0 %v871
        %v985 = vpop.f32.mrb[0].mxu0
        %v986 = vadd.f32 0.0, %v985
        %v987 = vpop.f32.mrb[0].mxu0
        %v988 = vpop.f32.mrb[0].mxu0
        %v989 = vadd.f32 0.0, %v988
        %v990 = vpop.f32.mrb[0].mxu0
        %991 = vmatprep.mubr.bf16.mxu0 0
        %992 = vmatmul.mubr.bf16.gmra.mrb[0].mxu0 %v872
        %v993 = vpop.f32.mrb[0].mxu0
        %v994 = vadd.f32 0.0, %v993
        %v995 = vpop.f32.mrb[0].mxu0
        %v996 = vpop.f32.mrb[0].mxu0
        %v997 = vadd.f32 0.0, %v996
        %v998 = vpop.f32.mrb[0].mxu0
        %999 = vmatprep.mubr.bf16.mxu0 0
        %1000 = vmatmul.mubr.bf16.gmra.mrb[0].mxu0 %v873
        %v1001 = vpop.f32.mrb[0].mxu0
        %v1002 = vadd.f32 0.0, %v1001
        %v1003 = vpop.f32.mrb[0].mxu0
        %v1004 = vpop.f32.mrb[0].mxu0
        %v1005 = vadd.f32 0.0, %v1004
        %v1006 = vpop.f32.mrb[0].mxu0
        %1007 = vmatprep.mubr.bf16.mxu0 0
        %1008 = vmatmul.mubr.bf16.gmra.mrb[0].mxu0 %v874
        %v1009 = vpop.f32.mrb[0].mxu0
        %v1010 = vadd.f32 0.0, %v1009
        %v1011 = vpop.f32.mrb[0].mxu0
        %v1012 = vpop.f32.mrb[0].mxu0
        %v1013 = vadd.f32 0.0, %v1012
        %v1014 = vpop.f32.mrb[0].mxu0
        %1015 = vmatprep.mubr.bf16.mxu0 0
        %1016 = vmatmul.mubr.bf16.gmra.mrb[0].mxu0 %v875
        %v1017 = vpop.f32.mrb[0].mxu0
        %v1018 = vadd.f32 0.0, %v1017
        %v1019 = vpop.f32.mrb[0].mxu0
        %v1020 = vpop.f32.mrb[0].mxu0
        %v1021 = vadd.f32 0.0, %v1020
        %v1022 = vpop.f32.mrb[0].mxu0
        %1023 = vmatprep.mubr.bf16.mxu0 0
        %1024 = vmatmul.mubr.bf16.gmra.mrb[0].mxu0 %v876
        %v1025 = vpop.f32.mrb[0].mxu0
        %v1026 = vadd.f32 0.0, %v1025
        %v1027 = vpop.f32.mrb[0].mxu0
        %v1028 = vpop.f32.mrb[0].mxu0
        %v1029 = vadd.f32 0.0, %v1028
        %v1030 = vpop.f32.mrb[0].mxu0
        %1031 = vmatprep.mubr.bf16.mxu0 0
        %1032 = vmatmul.mubr.bf16.gmra.mrb[0].mxu0 %v877
        %v1033 = vpop.f32.mrb[0].mxu0
        %v1034 = vadd.f32 0.0, %v1033
        %v1035 = vpop.f32.mrb[0].mxu0
        %v1036 = vpop.f32.mrb[0].mxu0
        %v1037 = vadd.f32 0.0, %v1036
        %v1038 = vpop.f32.mrb[0].mxu0
        %1039 = vmatprep.mubr.bf16.mxu0 0
        %1040 = vmatmul.mubr.bf16.gmra.mrb[0].mxu0 %v878
        %v1041 = vpop.f32.mrb[0].mxu0
        %v1042 = vadd.f32 0.0, %v1041
        %v1043 = vpop.f32.mrb[0].mxu0
        %v1044 = vpop.f32.mrb[0].mxu0
        %v1045 = vadd.f32 0.0, %v1044
        %v1046 = vpop.f32.mrb[0].mxu0
        %1047 = vmatprep.mubr.bf16.mxu0 0
        %1048 = vmatmul.mubr.bf16.gmra.mrb[0].mxu0 %v879
        %v1049 = vpop.f32.mrb[0].mxu0
        %v1050 = vadd.f32 0.0, %v1049
        %v1051 = vpop.f32.mrb[0].mxu0
        %v1052 = vpop.f32.mrb[0].mxu0
        %v1053 = vadd.f32 0.0, %v1052
        %v1054 = vpop.f32.mrb[0].mxu0
        %1055 = vmatprep.mubr.bf16.mxu0 0
        %1056 = vmatmul.mubr.bf16.gmra.mrb[0].mxu0 %v880
        %v1057 = vpop.f32.mrb[0].mxu0
        %v1058 = vadd.f32 0.0, %v1057
        %v1059 = vpop.f32.mrb[0].mxu0
        %v1060 = vpop.f32.mrb[0].mxu0
        %v1061 = vadd.f32 0.0, %v1060
        %v1062 = vpop.f32.mrb[0].mxu0
        %1063 = vmatprep.mubr.bf16.mxu0 0
        %1064 = vmatmul.mubr.bf16.gmra.mrb[0].mxu0 %v881
        %v1065 = vpop.f32.mrb[0].mxu0
        %v1066 = vadd.f32 0.0, %v1065
        %v1067 = vpop.f32.mrb[0].mxu0
        %v1068 = vpop.f32.mrb[0].mxu0
        %v1069 = vadd.f32 0.0, %v1068
        %v1070 = vpop.f32.mrb[0].mxu0
        %1071 = vmatprep.mubr.bf16.mxu0 0
        %1072 = vmatmul.mubr.bf16.gmra.mrb[0].mxu0 %v882
        %v1073 = vpop.f32.mrb[0].mxu0
        %v1074 = vadd.f32 0.0, %v1073
        %v1075 = vpop.f32.mrb[0].mxu0
        %v1076 = vpop.f32.mrb[0].mxu0
        %v1077 = vadd.f32 0.0, %v1076
        %v1078 = vpop.f32.mrb[0].mxu0
        %1079 = vmatprep.mubr.bf16.mxu0 0
        %1080 = vmatmul.mubr.bf16.gmra.mrb[0].mxu0 %v883
        %v1081 = vpop.f32.mrb[0].mxu0
        %v1082 = vadd.f32 0.0, %v1081
        %v1083 = vpop.f32.mrb[0].mxu0
        %v1084 = vpop.f32.mrb[0].mxu0
        %v1085 = vadd.f32 0.0, %v1084
        %v1086 = vpop.f32.mrb[0].mxu0
        %1087 = vmatprep.mubr.bf16.mxu0 0
        %1088 = vmatmul.mubr.bf16.gmra.mrb[0].mxu0 %v884
        %v1089 = vpop.f32.mrb[0].mxu0
        %v1090 = vadd.f32 0.0, %v1089
        %v1091 = vpop.f32.mrb[0].mxu0
        %v1092 = vpop.f32.mrb[0].mxu0
        %v1093 = vadd.f32 0.0, %v1092
        %v1094 = vpop.f32.mrb[0].mxu0
        %1095 = vmatprep.mubr.bf16.mxu0 0
        %1096 = vmatmul.mubr.bf16.gmra.mrb[0].mxu0 %v885
        %v1097 = vpop.f32.mrb[0].mxu0
        %v1098 = vadd.f32 0.0, %v1097
        %v1099 = vpop.f32.mrb[0].mxu0
        %v1100 = vpop.f32.mrb[0].mxu0
        %v1101 = vadd.f32 0.0, %v1100
        %v1102 = vpop.f32.mrb[0].mxu0
        %1103 = vmatprep.mubr.bf16.mxu0 0
        %1104 = vmatmul.mubr.bf16.gmra.mrb[0].mxu0 %v886
        %v1105 = vpop.f32.mrb[0].mxu0
        %v1106 = vadd.f32 0.0, %v1105
        %v1107 = vpop.f32.mrb[0].mxu0
        %v1108 = vpop.f32.mrb[0].mxu0
        %v1109 = vadd.f32 0.0, %v1108
        %v1110 = vpop.f32.mrb[0].mxu0
        %1111 = vdwg.mxu0
        %v1112 = vpack.c.bf16 %v989, %v986
        %v1113 = vpack.c.bf16 %v997, %v994
        %v1114 = vpack.c.bf16 %v1005, %v1002
        %v1115 = vpack.c.bf16 %v1013, %v1010
        %v1116 = vpack.c.bf16 %v1021, %v1018
        %v1117 = vpack.c.bf16 %v1029, %v1026
        %v1118 = vpack.c.bf16 %v1037, %v1034
        %v1119 = vpack.c.bf16 %v1045, %v1042
        %v1120 = vpack.c.bf16 %v1053, %v1050
        %v1121 = vpack.c.bf16 %v1061, %v1058
        %v1122 = vpack.c.bf16 %v1069, %v1066
        %v1123 = vpack.c.bf16 %v1077, %v1074
        %v1124 = vpack.c.bf16 %v1085, %v1082
        %v1125 = vpack.c.bf16 %v1093, %v1090
        %v1126 = vpack.c.bf16 %v1101, %v1098
        %v1127 = vpack.c.bf16 %v1109, %v1106
        %v1128 = vld [vmem:[%s344] sm:$0x1]
        %v1130 = vlaneseq
        %v1131 = vshrl.u32 %v1130, 7
        %v1132 = vsub.s32 0, %v1131
        %v1133 = vrot.slane %v1128, %v1132
        %1135 = vmatprep.subr.bf16.mxu0 0
        %1136 = vmatpush1.bf16.msra.mxu0 %v1112
        %1137 = vmatprep.subr.bf16.mxu0 0
        %1138 = vmatpush1.bf16.msra.mxu0 %v1113
        %1139 = vmatprep.subr.bf16.mxu0 0
        %1140 = vmatpush1.bf16.msra.mxu0 %v1114
        %1141 = vmatprep.subr.bf16.mxu0 0
        %1142 = vmatpush1.bf16.msra.mxu0 %v1115
        %1143 = vmatprep.subr.bf16.mxu0 0
        %1144 = vmatpush1.bf16.msra.mxu0 %v1116
        %1145 = vmatprep.subr.bf16.mxu0 0
        %1146 = vmatpush1.bf16.msra.mxu0 %v1117
        %1147 = vmatprep.subr.bf16.mxu0 0
        %1148 = vmatpush1.bf16.msra.mxu0 %v1118
        %1149 = vmatprep.subr.bf16.mxu0 0
        %1150 = vmatpush1.bf16.msra.mxu0 %v1119
        %1151 = vmatprep.subr.bf16.mxu0 0
        %1152 = vmatpush1.bf16.msra.mxu0 %v1120
        %1153 = vmatprep.subr.bf16.mxu0 0
        %1154 = vmatpush1.bf16.msra.mxu0 %v1121
        %1155 = vmatprep.subr.bf16.mxu0 0
        %1156 = vmatpush1.bf16.msra.mxu0 %v1122
        %1157 = vmatprep.subr.bf16.mxu0 0
        %1158 = vmatpush1.bf16.msra.mxu0 %v1123
        %1159 = vmatprep.subr.bf16.mxu0 0
        %1160 = vmatpush1.bf16.msra.mxu0 %v1124
        %1161 = vmatprep.subr.bf16.mxu0 0
        %1162 = vmatpush1.bf16.msra.mxu0 %v1125
        %1163 = vmatprep.subr.bf16.mxu0 0
        %1164 = vmatpush1.bf16.msra.mxu0 %v1126
        %1165 = vmatprep.subr.bf16.mxu0 0
        %1166 = vmatpush1.bf16.msra.mxu0 %v1127
        %1167 = vmatprep.mubr.bf16.mxu0 %v519
        %1168 = vmatmul.mubr.bf16.gmra.mrb[0].mxu0 %v518
        %v1169 = vpop.f32.mrb[0].mxu0
        %v1170 = vadd.f32 %v1133, %v1169
        %v1171 = vpop.f32.mrb[0].mxu0
        %v1172 = vpop.f32.mrb[0].mxu0
        %v1173 = vadd.f32 %v1133, %v1172
        %v1174 = vpop.f32.mrb[0].mxu0
        %1175 = vmatprep.mubr.bf16.mxu0 %v521
        %1176 = vmatmul.mubr.bf16.gmra.mrb[0].mxu0 %v520
        %v1177 = vpop.f32.mrb[0].mxu0
        %v1178 = vadd.f32 %v1133, %v1177
        %v1179 = vpop.f32.mrb[0].mxu0
        %v1180 = vpop.f32.mrb[0].mxu0
        %v1181 = vadd.f32 %v1133, %v1180
        %v1182 = vpop.f32.mrb[0].mxu0
        %1183 = vmatprep.mubr.bf16.mxu0 %v523
        %1184 = vmatmul.mubr.bf16.gmra.mrb[0].mxu0 %v522
        %v1185 = vpop.f32.mrb[0].mxu0
        %v1186 = vadd.f32 %v1133, %v1185
        %v1187 = vpop.f32.mrb[0].mxu0
        %v1188 = vpop.f32.mrb[0].mxu0
        %v1189 = vadd.f32 %v1133, %v1188
        %v1190 = vpop.f32.mrb[0].mxu0
        %1191 = vmatprep.mubr.bf16.mxu0 %v525
        %1192 = vmatmul.mubr.bf16.gmra.mrb[0].mxu0 %v524
        %v1193 = vpop.f32.mrb[0].mxu0
        %v1194 = vadd.f32 %v1133, %v1193
        %v1195 = vpop.f32.mrb[0].mxu0
        %v1196 = vpop.f32.mrb[0].mxu0
        %v1197 = vadd.f32 %v1133, %v1196
        %v1198 = vpop.f32.mrb[0].mxu0
        %1199 = vmatprep.mubr.bf16.mxu0 %v527
        %1200 = vmatmul.mubr.bf16.gmra.mrb[0].mxu0 %v526
        %v1201 = vpop.f32.mrb[0].mxu0
        %v1202 = vadd.f32 %v1133, %v1201
        %v1203 = vpop.f32.mrb[0].mxu0
        %v1204 = vpop.f32.mrb[0].mxu0
        %v1205 = vadd.f32 %v1133, %v1204
        %v1206 = vpop.f32.mrb[0].mxu0
        %1207 = vmatprep.mubr.bf16.mxu0 %v529
        %1208 = vmatmul.mubr.bf16.gmra.mrb[0].mxu0 %v528
        %v1209 = vpop.f32.mrb[0].mxu0
        %v1210 = vadd.f32 %v1133, %v1209
        %v1211 = vpop.f32.mrb[0].mxu0
        %v1212 = vpop.f32.mrb[0].mxu0
        %v1213 = vadd.f32 %v1133, %v1212
        %v1214 = vpop.f32.mrb[0].mxu0
        %1215 = vmatprep.mubr.bf16.mxu0 %v531
        %1216 = vmatmul.mubr.bf16.gmra.mrb[0].mxu0 %v530
        %v1217 = vpop.f32.mrb[0].mxu0
        %v1218 = vadd.f32 %v1133, %v1217
        %v1219 = vpop.f32.mrb[0].mxu0
        %v1220 = vpop.f32.mrb[0].mxu0
        %v1221 = vadd.f32 %v1133, %v1220
        %v1222 = vpop.f32.mrb[0].mxu0
        %1223 = vmatprep.mubr.bf16.mxu0 %v533
        %1224 = vmatmul.mubr.bf16.gmra.mrb[0].mxu0 %v532
        %v1225 = vpop.f32.mrb[0].mxu0
        %v1226 = vadd.f32 %v1133, %v1225
        %v1227 = vpop.f32.mrb[0].mxu0
        %v1228 = vpop.f32.mrb[0].mxu0
        %v1229 = vadd.f32 %v1133, %v1228
        %v1230 = vpop.f32.mrb[0].mxu0
        %1231 = vmatprep.mubr.bf16.mxu0 %v535
        %1232 = vmatmul.mubr.bf16.gmra.mrb[0].mxu0 %v534
        %v1233 = vpop.f32.mrb[0].mxu0
        %v1234 = vadd.f32 %v1133, %v1233
        %v1235 = vpop.f32.mrb[0].mxu0
        %v1236 = vpop.f32.mrb[0].mxu0
        %v1237 = vadd.f32 %v1133, %v1236
        %v1238 = vpop.f32.mrb[0].mxu0
        %1239 = vmatprep.mubr.bf16.mxu0 %v537
        %1240 = vmatmul.mubr.bf16.gmra.mrb[0].mxu0 %v536
        %v1241 = vpop.f32.mrb[0].mxu0
        %v1242 = vadd.f32 %v1133, %v1241
        %v1243 = vpop.f32.mrb[0].mxu0
        %v1244 = vpop.f32.mrb[0].mxu0
        %v1245 = vadd.f32 %v1133, %v1244
        %v1246 = vpop.f32.mrb[0].mxu0
        %1247 = vmatprep.mubr.bf16.mxu0 %v539
        %1248 = vmatmul.mubr.bf16.gmra.mrb[0].mxu0 %v538
        %v1249 = vpop.f32.mrb[0].mxu0
        %v1250 = vadd.f32 %v1133, %v1249
        %v1251 = vpop.f32.mrb[0].mxu0
        %v1252 = vpop.f32.mrb[0].mxu0
        %v1253 = vadd.f32 %v1133, %v1252
        %v1254 = vpop.f32.mrb[0].mxu0
        %1255 = vmatprep.mubr.bf16.mxu0 %v541
        %1256 = vmatmul.mubr.bf16.gmra.mrb[0].mxu0 %v540
        %v1257 = vpop.f32.mrb[0].mxu0
        %v1258 = vadd.f32 %v1133, %v1257
        %v1259 = vpop.f32.mrb[0].mxu0
        %v1260 = vpop.f32.mrb[0].mxu0
        %v1261 = vadd.f32 %v1133, %v1260
        %v1262 = vpop.f32.mrb[0].mxu0
        %1263 = vmatprep.mubr.bf16.mxu0 %v543
        %1264 = vmatmul.mubr.bf16.gmra.mrb[0].mxu0 %v542
        %v1265 = vpop.f32.mrb[0].mxu0
        %v1266 = vadd.f32 %v1133, %v1265
        %v1267 = vpop.f32.mrb[0].mxu0
        %v1268 = vpop.f32.mrb[0].mxu0
        %v1269 = vadd.f32 %v1133, %v1268
        %v1270 = vpop.f32.mrb[0].mxu0
        %1271 = vmatprep.mubr.bf16.mxu0 %v545
        %1272 = vmatmul.mubr.bf16.gmra.mrb[0].mxu0 %v544
        %v1273 = vpop.f32.mrb[0].mxu0
        %v1274 = vadd.f32 %v1133, %v1273
        %v1275 = vpop.f32.mrb[0].mxu0
        %v1276 = vpop.f32.mrb[0].mxu0
        %v1277 = vadd.f32 %v1133, %v1276
        %v1278 = vpop.f32.mrb[0].mxu0
        %1279 = vmatprep.mubr.bf16.mxu0 %v547
        %1280 = vmatmul.mubr.bf16.gmra.mrb[0].mxu0 %v546
        %v1281 = vpop.f32.mrb[0].mxu0
        %v1282 = vadd.f32 %v1133, %v1281
        %v1283 = vpop.f32.mrb[0].mxu0
        %v1284 = vpop.f32.mrb[0].mxu0
        %v1285 = vadd.f32 %v1133, %v1284
        %v1286 = vpop.f32.mrb[0].mxu0
        %1287 = vmatprep.mubr.bf16.mxu0 %v549
        %1288 = vmatmul.mubr.bf16.gmra.mrb[0].mxu0 %v548
        %v1289 = vpop.f32.mrb[0].mxu0
        %v1290 = vadd.f32 %v1133, %v1289
        %v1291 = vpop.f32.mrb[0].mxu0
        %v1292 = vpop.f32.mrb[0].mxu0
        %v1293 = vadd.f32 %v1133, %v1292
        %v1294 = vpop.f32.mrb[0].mxu0
        %1295 = vdwg.mxu0
        %v1296 = vpack.c.bf16 %v1173, %v1170
        %v1297 = vpack.c.bf16 %v1181, %v1178
        %v1298 = vpack.c.bf16 %v1189, %v1186
        %v1299 = vpack.c.bf16 %v1197, %v1194
        %v1300 = vpack.c.bf16 %v1205, %v1202
        %v1301 = vpack.c.bf16 %v1213, %v1210
        %v1302 = vpack.c.bf16 %v1221, %v1218
        %v1303 = vpack.c.bf16 %v1229, %v1226
        %v1304 = vpack.c.bf16 %v1237, %v1234
        %v1305 = vpack.c.bf16 %v1245, %v1242
        %v1306 = vpack.c.bf16 %v1253, %v1250
        %v1307 = vpack.c.bf16 %v1261, %v1258
        %v1308 = vpack.c.bf16 %v1269, %v1266
        %v1309 = vpack.c.bf16 %v1277, %v1274
        %v1310 = vpack.c.bf16 %v1285, %v1282
        %v1311 = vpack.c.bf16 %v1293, %v1290
        %v1328 = vunpack.c.l.b16 %v1296
        %v1329 = vunpack.c.h.b16 %v1296
        %v1330 = vunpack.c.l.b16 %v1297
        %v1331 = vunpack.c.h.b16 %v1297
        %v1332 = vunpack.c.l.b16 %v1298
        %v1333 = vunpack.c.h.b16 %v1298
        %v1334 = vunpack.c.l.b16 %v1299
        %v1335 = vunpack.c.h.b16 %v1299
        %v1336 = vunpack.c.l.b16 %v1300
        %v1337 = vunpack.c.h.b16 %v1300
        %v1338 = vunpack.c.l.b16 %v1301
        %v1339 = vunpack.c.h.b16 %v1301
        %v1340 = vunpack.c.l.b16 %v1302
        %v1341 = vunpack.c.h.b16 %v1302
        %v1342 = vunpack.c.l.b16 %v1303
        %v1343 = vunpack.c.h.b16 %v1303
        %v1344 = vunpack.c.l.b16 %v1304
        %v1345 = vunpack.c.h.b16 %v1304
        %v1346 = vunpack.c.l.b16 %v1305
        %v1347 = vunpack.c.h.b16 %v1305
        %v1348 = vunpack.c.l.b16 %v1306
        %v1349 = vunpack.c.h.b16 %v1306
        %v1350 = vunpack.c.l.b16 %v1307
        %v1351 = vunpack.c.h.b16 %v1307
        %v1352 = vunpack.c.l.b16 %v1308
        %v1353 = vunpack.c.h.b16 %v1308
        %v1354 = vunpack.c.l.b16 %v1309
        %v1355 = vunpack.c.h.b16 %v1309
        %v1356 = vunpack.c.l.b16 %v1310
        %v1357 = vunpack.c.h.b16 %v1310
        %v1358 = vunpack.c.l.b16 %v1311
        %v1359 = vunpack.c.h.b16 %v1311
        %v1360 = vpack.c.b16 %v1328, %v1328
        %v1361 = vpack.c.b16 %v1329, %v1329
        %v1362 = vpack.c.b16 %v1330, %v1330
        %v1363 = vpack.c.b16 %v1331, %v1331
        %v1364 = vpack.c.b16 %v1332, %v1332
        %v1365 = vpack.c.b16 %v1333, %v1333
        %v1366 = vpack.c.b16 %v1334, %v1334
        %v1367 = vpack.c.b16 %v1335, %v1335
        %v1368 = vpack.c.b16 %v1336, %v1336
        %v1369 = vpack.c.b16 %v1337, %v1337
        %v1370 = vpack.c.b16 %v1338, %v1338
        %v1371 = vpack.c.b16 %v1339, %v1339
        %v1372 = vpack.c.b16 %v1340, %v1340
        %v1373 = vpack.c.b16 %v1341, %v1341
        %v1374 = vpack.c.b16 %v1342, %v1342
        %v1375 = vpack.c.b16 %v1343, %v1343
        %v1376 = vpack.c.b16 %v1344, %v1344
        %v1377 = vpack.c.b16 %v1345, %v1345
        %v1378 = vpack.c.b16 %v1346, %v1346
        %v1379 = vpack.c.b16 %v1347, %v1347
        %v1380 = vpack.c.b16 %v1348, %v1348
        %v1381 = vpack.c.b16 %v1349, %v1349
        %v1382 = vpack.c.b16 %v1350, %v1350
        %v1383 = vpack.c.b16 %v1351, %v1351
        %v1384 = vpack.c.b16 %v1352, %v1352
        %v1385 = vpack.c.b16 %v1353, %v1353
        %v1386 = vpack.c.b16 %v1354, %v1354
        %v1387 = vpack.c.b16 %v1355, %v1355
        %v1388 = vpack.c.b16 %v1356, %v1356
        %v1389 = vpack.c.b16 %v1357, %v1357
        %v1390 = vpack.c.b16 %v1358, %v1358
        %v1391 = vpack.c.b16 %v1359, %v1359
        %1424 = vst [vmem:[%s349] sm:$0xf] %v1360
        %1425 = vst [vmem:[%s349 + $0x4] sm:$0xf] %v1361
        %1426 = vst [vmem:[%s349 + $0x8] sm:$0xf] %v1362
        %1427 = vst [vmem:[%s349 + $0xc] sm:$0xf] %v1363
        %1428 = vst [vmem:[%s349 + $0x10] sm:$0xf] %v1364
        %1429 = vst [vmem:[%s349 + $0x14] sm:$0xf] %v1365
        %1430 = vst [vmem:[%s349 + $0x18] sm:$0xf] %v1366
        %1431 = vst [vmem:[%s349 + $0x1c] sm:$0xf] %v1367
        %1432 = vst [vmem:[%s349 + $0x20] sm:$0xf] %v1368
        %1433 = vst [vmem:[%s349 + $0x24] sm:$0xf] %v1369
        %1434 = vst [vmem:[%s349 + $0x28] sm:$0xf] %v1370
        %1435 = vst [vmem:[%s349 + $0x2c] sm:$0xf] %v1371
        %1436 = vst [vmem:[%s349 + $0x30] sm:$0xf] %v1372
        %1437 = vst [vmem:[%s349 + $0x34] sm:$0xf] %v1373
        %1438 = vst [vmem:[%s349 + $0x38] sm:$0xf] %v1374
        %1439 = vst [vmem:[%s349 + $0x3c] sm:$0xf] %v1375
        %1440 = vst [vmem:[%s349 + $0x40] sm:$0xf] %v1376
        %1441 = vst [vmem:[%s349 + $0x44] sm:$0xf] %v1377
        %1442 = vst [vmem:[%s349 + $0x48] sm:$0xf] %v1378
        %1443 = vst [vmem:[%s349 + $0x4c] sm:$0xf] %v1379
        %1444 = vst [vmem:[%s349 + $0x50] sm:$0xf] %v1380
        %1445 = vst [vmem:[%s349 + $0x54] sm:$0xf] %v1381
        %1446 = vst [vmem:[%s349 + $0x58] sm:$0xf] %v1382
        %1447 = vst [vmem:[%s349 + $0x5c] sm:$0xf] %v1383
        %1448 = vst [vmem:[%s349 + $0x60] sm:$0xf] %v1384
        %1449 = vst [vmem:[%s349 + $0x64] sm:$0xf] %v1385
        %1450 = vst [vmem:[%s349 + $0x68] sm:$0xf] %v1386
        %1451 = vst [vmem:[%s349 + $0x6c] sm:$0xf] %v1387
        %1452 = vst [vmem:[%s349 + $0x70] sm:$0xf] %v1388
        %1453 = vst [vmem:[%s349 + $0x74] sm:$0xf] %v1389
        %1454 = vst [vmem:[%s349 + $0x78] sm:$0xf] %v1390
        %1455 = vst [vmem:[%s349 + $0x7c] sm:$0xf] %v1391
        %p1456 = scmp.lt.s32.totalorder %s22, 1
        %s1457 = scalar_select %p1456, %s22, 1
        %s1458 = smul.addr %s1457, 32
        %s1459 = smul.addr %s1458, 4
        %s1460 = scalar_lea.vmem %s5, %s1459
        // Predicated region
        $region53: #{gcn_apply.1} parent=39 // pred_check
          %p1461 = pneg %p170
        $region54: #{gcn_apply.1} parent=39 // pred_check_branch
          %1463 = sbr.rel (%p1461) target = $region56
        $region55: #{gcn_apply.1} parent=39 // pred_region
          _
        $region56: #{gcn_apply.1} parent=39 // pred_fallthru
          _
      $region40: #{gcn_apply.1} parent=5 // pred_fallthru
        _
      %p1464 = scmp.le.s32.totalorder 2, %s17
      // Predicated region
      $region57: #{gcn_apply.1} parent=5 // pred_check
        %p1465 = pneg %p1464
      $region58: #{gcn_apply.1} parent=5 // pred_check_branch
        %1467 = sbr.rel (%p1465) target = $region60
      $region59: #{gcn_apply.1} parent=5 // pred_region
        %s1468 = ssub.s32 %s17, 2
        // Predicated region
        $region61: #{gcn_apply.1} parent=59 // pred_check
          %p1469 = pneg %p176
        $region62: #{gcn_apply.1} parent=59 // pred_check_branch
          %1471 = sbr.rel (%p1469) target = $region64
        $region63: #{gcn_apply.1} parent=59 // pred_region
          %p1472 = scmp.lt.s32.totalorder %s23, 1
          %s1473 = scalar_select %p1472, %s23, 1
          %s1474 = smul.addr %s1473, 32
          %s1475 = smul.addr %s1474, 4
          %s1476 = scalar_lea.vmem %s5, %s1475
        $region64: #{gcn_apply.1} parent=59 // pred_fallthru
          _
      $region60: #{gcn_apply.1} parent=5 // pred_fallthru
        _
    $region6: #{gcn_apply.1} parent=1 // loop_footer
      %s21 = sadd.s32 1, %s17
    $region7: #{gcn_apply.1} parent=1 // loop_footer_branch
      %16 = sbr.rel target = $region3
    $region8: #{gcn_apply.1} parent=1 // loop_exit
      _
    %1477 = vsyncpa [#allocation3], 1
    %s1478 = scalar_lea.sflag [#allocation3], 1
    %1479 = vsyncpa %s1478, 1
    %1480 = vsyncpa [#allocation5], 1
    %s1481 = scalar_lea.sflag [#allocation5], 1
    %1482 = vsyncpa %s1481, 1

</llo_original>
